<compile_context>
chip_gen: v5e
topology: v5e:2x2
jax: 0.10.0
libtpu: 0.0.40
codegen_flags: <defaults>
</compile_context>

<pallas_src>
import jax
import jax.numpy as jnp
from jax import lax
from jax.experimental import pallas as pl
from jax.experimental.pallas import tpu as pltpu

LN_EPS = 1e-5


def _attn_pool_kernel(x_ref, mask_ref, w1_ref, consts_ref, out_ref):
    # x_ref:      (TB, S, D)  activations, native dtype (fp32 or bf16)
    # mask_ref:   (TB, 1, S)  int32 attention mask (lane-major in S)
    # w1_ref:     (D, D)      first Linear weight, same dtype as x
    # consts_ref: (5, D)      fp32 rows: [b1, gamma, beta, w2_row, b2_broadcast]
    # out_ref:    (TB, D)     fp32 pooled embeddings
    TB, S, D = x_ref.shape
    x = x_ref[...]                                           # (TB, S, D)

    c = consts_ref[...]                                      # (5, D) fp32
    b1, gamma, beta, w2_row = c[0:1, :], c[1:2, :], c[2:3, :], c[3:4, :]
    b2 = c[4:5, 0:1]                                         # (1, 1)

    # ---- Linear(in_dim, in_dim): flatten so the MXU sees M = TB*S ----
    x2d = x.reshape(TB * S, D)
    h = jnp.dot(x2d, w1_ref[...], preferred_element_type=jnp.float32) + b1

    # ---- LayerNorm(in_dim) (fp32) ----
    mu = jnp.mean(h, axis=-1, keepdims=True)
    var = jnp.mean((h - mu) * (h - mu), axis=-1, keepdims=True)
    h = (h - mu) * lax.rsqrt(var + LN_EPS)
    h = h * gamma + beta

    # ---- GELU (exact erf form; matches nn.GELU default) ----
    h = 0.5 * h * (1.0 + lax.erf(h * 0.7071067811865475))

    # ---- Linear(in_dim, 1): VPU multiply by w2 row + lane reduce (no N=1 MXU pass) ----
    h3 = h.reshape(TB, S, D)
    scores = jnp.sum(h3 * w2_row, axis=-1) + b2              # (TB, S) fp32

    # ---- mask: scores[attention_mask == 0] = -inf ----
    mask = mask_ref[...][:, 0, :]                            # (TB, S) int32
    scores = jnp.where(mask == 0, -jnp.inf, scores)

    # ---- softmax over the sequence (lane) axis ----
    m = jnp.max(scores, axis=-1, keepdims=True)
    e = jnp.exp(scores - m)
    denom = jnp.sum(e, axis=-1, keepdims=True)
    probs = e * pl.reciprocal(denom, approx=True)            # (TB, S) fp32

    # ---- weighted sum over S on the MXU: (TB,1,S) @ (TB,S,D) -> (TB,1,D) ----
    pooled = jnp.einsum('bqs,bsd->bqd',
                        probs[:, None, :].astype(x.dtype), x,
                        preferred_element_type=jnp.float32)
    out_ref[...] = pooled[:, 0, :].astype(out_ref.dtype)


def _choose_batch_tile(B, S, D, x_itemsize, budget_bytes=40 * 1024 * 1024):
    """Largest batch tile whose double-buffered streams + resident weights fit VMEM."""
    def fits(tb):
        x_tile = tb * S * D * x_itemsize
        mask_tile = tb * S * 4
        out_tile = tb * D * 4
        weights = D * D * x_itemsize + 8 * D * 4
        return 2 * (x_tile + mask_tile + out_tile) + 2 * weights <= budget_bytes

    if fits(B):
        return B                                # single grid step, no padding needed
    # 8-aligned divisors of B (sublane-friendly output blocks, no padding)
    divs8 = [t for t in range(B, 0, -1) if B % t == 0 and t % 8 == 0 and fits(t)]
    if divs8:
        return divs8[0]
    # otherwise use an 8-aligned tile and pad the batch up to a multiple of it
    tb = 8
    while fits(tb * 2) and tb * 2 < B:
        tb *= 2
    return tb


def attention_pooling(last_hidden_state, attention_mask, params):
    B, S, D = last_hidden_state.shape
    w1, b1, gamma, beta, w2, b2 = params

    x = last_hidden_state                        # keep native dtype (no fp32 HBM copy)
    w1c = w1.astype(x.dtype)                     # match MXU operand dtype
    mask3 = attention_mask.reshape(B, 1, S).astype(jnp.int32)

    # fuse small per-feature constants into one (5, D) fp32 slab
    consts = jnp.stack([
        b1.astype(jnp.float32),
        gamma.astype(jnp.float32),
        beta.astype(jnp.float32),
        w2.reshape(-1).astype(jnp.float32),
        jnp.full((D,), b2.reshape(()).astype(jnp.float32)),
    ], axis=0)

    TB = _choose_batch_tile(B, S, D, x.dtype.itemsize)
    B_pad = -(-B // TB) * TB
    if B_pad != B:
        # pad rows: zero activations, all-ones mask (uniform softmax over zeros -> 0,
        # no NaNs); padded rows are sliced off below.
        x = jnp.pad(x, ((0, B_pad - B), (0, 0), (0, 0)))
        mask3 = jnp.pad(mask3, ((0, B_pad - B), (0, 0), (0, 0)), constant_values=1)
    grid = (B_pad // TB,)

    out = pl.pallas_call(
        _attn_pool_kernel,
        out_shape=jax.ShapeDtypeStruct((B_pad, D), jnp.float32),
        grid_spec=pltpu.PrefetchScalarGridSpec(
            num_scalar_prefetch=0,
            grid=grid,
            in_specs=[
                pl.BlockSpec((TB, S, D), lambda b: (b, 0, 0)),   # x
                pl.BlockSpec((TB, 1, S), lambda b: (b, 0, 0)),   # mask
                pl.BlockSpec((D, D), lambda b: (0, 0)),          # W1 (resident)
                pl.BlockSpec((5, D), lambda b: (0, 0)),          # fused consts (resident)
            ],
            out_specs=pl.BlockSpec((TB, D), lambda b: (b, 0)),
        ),
        compiler_params=pltpu.CompilerParams(
            dimension_semantics=("parallel",),
            vmem_limit_bytes=64 * 1024 * 1024),
    )(x, mask3, w1c, consts)
    return out[:B] if B_pad != B else out


def attention_pooling_ref(x, mask, params):
    # pure-JAX reference mirroring the PyTorch forward
    w1, b1, gamma, beta, w2, b2 = params
    h = x @ w1 + b1
    mu = jnp.mean(h, axis=-1, keepdims=True)
    var = jnp.mean((h - mu) ** 2, axis=-1, keepdims=True)
    h = (h - mu) / jnp.sqrt(var + LN_EPS) * gamma + beta
    h = 0.5 * h * (1.0 + lax.erf(h / jnp.sqrt(2.0)))
    w = (h @ w2 + b2).astype(jnp.float32)                     # (B, S, 1)
    w = jnp.where(mask[..., None] == 0, -jnp.inf, w)
    w = jax.nn.softmax(w, axis=1)
    return jnp.sum(w * x, axis=1)


def init_params(key, in_dim):
    k1, k2, k3, k4 = jax.random.split(key, 4)
    lim1 = 1.0 / jnp.sqrt(in_dim)
    w1 = jax.random.uniform(k1, (in_dim, in_dim), jnp.float32, -lim1, lim1)
    b1 = jax.random.uniform(k2, (in_dim,), jnp.float32, -lim1, lim1)
    gamma = jnp.ones((in_dim,), jnp.float32)      # LayerNorm defaults
    beta = jnp.zeros((in_dim,), jnp.float32)
    w2 = jax.random.uniform(k3, (in_dim, 1), jnp.float32, -lim1, lim1)
    b2 = jax.random.uniform(k4, (1,), jnp.float32, -lim1, lim1)
    return (w1, b1, gamma, beta, w2, b2)


if __name__ == "__main__":
    B, S, D = 2, 8, 32
    key = jax.random.PRNGKey(0)
    kx, kp = jax.random.split(key)
    x = jax.random.normal(kx, (B, S, D), jnp.float32)
    # attention mask: row 0 fully valid, row 1 has trailing padding
    mask = jnp.array([[1] * S, [1] * (S // 2) + [0] * (S - S // 2)], dtype=jnp.int32)
    params = init_params(kp, D)

    out = jax.block_until_ready(attention_pooling(x, mask, params))
    ref = attention_pooling_ref(x, mask, params)

    assert out.shape == (B, D)
    # tolerance accounts for the approx (EUP) reciprocal in the softmax denominator
    assert jnp.allclose(out, ref, atol=2e-3, rtol=2e-3), (out, ref)
    print("KERNEL_OK")
</pallas_src>

<mosaic_0001>
module attributes {stable_mosaic.version = 11 : i64} {
  func.func @_attn_pool_kernel(%arg0: i32, %arg1: memref<2x8x32xf32, #tpu.memory_space<vmem>>, %arg2: memref<2x1x8xi32, #tpu.memory_space<vmem>>, %arg3: memref<32x32xf32, #tpu.memory_space<vmem>>, %arg4: memref<5x32xf32, #tpu.memory_space<vmem>>, %arg5: memref<2x32xf32, #tpu.memory_space<vmem>>) attributes {dimension_semantics = [#tpu.dimension_semantics<parallel>], iteration_bounds = array<i64: 1>, scalar_prefetch = 0 : i64, scratch_operands = 0 : i64, tpu.core_type = #tpu.core_type<tc>, window_params = [{transform_indices = @transform_0, window_bounds = array<i64: 2, 8, 32>}, {transform_indices = @transform_1, window_bounds = array<i64: 2, 1, 8>}, {pipeline_mode = #tpu.pipeline_mode<synchronous>, transform_indices = @transform_2, window_bounds = array<i64: 32, 32>}, {pipeline_mode = #tpu.pipeline_mode<synchronous>, transform_indices = @transform_3, window_bounds = array<i64: 5, 32>}, {transform_indices = @transform_4, window_bounds = array<i64: 2, 32>}]} {
    %c0 = arith.constant 0 : index
    %c0_0 = arith.constant 0 : index
    %c0_1 = arith.constant 0 : index
    %0 = vector.load %arg1[%c0, %c0_0, %c0_1] : memref<2x8x32xf32, #tpu.memory_space<vmem>>, vector<2x8x32xf32>
    %c0_2 = arith.constant 0 : index
    %c0_3 = arith.constant 0 : index
    %1 = vector.load %arg4[%c0_2, %c0_3] : memref<5x32xf32, #tpu.memory_space<vmem>>, vector<5x32xf32>
    %2 = vector.extract_strided_slice %1 {offsets = [0, 0], sizes = [1, 32], strides = [1, 1]} : vector<5x32xf32> to vector<1x32xf32>
    %3 = vector.extract_strided_slice %1 {offsets = [1, 0], sizes = [1, 32], strides = [1, 1]} : vector<5x32xf32> to vector<1x32xf32>
    %4 = vector.extract_strided_slice %1 {offsets = [2, 0], sizes = [1, 32], strides = [1, 1]} : vector<5x32xf32> to vector<1x32xf32>
    %5 = vector.extract_strided_slice %1 {offsets = [3, 0], sizes = [1, 32], strides = [1, 1]} : vector<5x32xf32> to vector<1x32xf32>
    %6 = vector.extract_strided_slice %1 {offsets = [4, 0], sizes = [1, 1], strides = [1, 1]} : vector<5x32xf32> to vector<1x1xf32>
    %7 = vector.shape_cast %0 : vector<2x8x32xf32> to vector<16x32xf32>
    %c0_4 = arith.constant 0 : index
    %c0_5 = arith.constant 0 : index
    %8 = vector.load %arg3[%c0_4, %c0_5] : memref<32x32xf32, #tpu.memory_space<vmem>>, vector<32x32xf32>
    %cst = arith.constant dense<0.000000e+00> : vector<16x32xf32>
    %9 = tpu.matmul %7, %8, %cst {dimension_numbers = #tpu.dot_dimension_numbers<[1], [0], [0], [1], [0, 0, 1, 1], [], []>} : vector<16x32xf32>, vector<32x32xf32>, vector<16x32xf32> -> vector<16x32xf32>
    %10 = vector.broadcast %2 : vector<1x32xf32> to vector<16x32xf32>
    %11 = arith.addf %9, %10 : vector<16x32xf32>
    %cst_6 = arith.constant dense<0.000000e+00> : vector<16xf32>
    %12 = vector.multi_reduction <add>, %11, %cst_6 [1] : vector<16x32xf32> to vector<16xf32>
    %13 = vector.shape_cast %12 : vector<16xf32> to vector<16x1xf32>
    %cst_7 = arith.constant 3.200000e+01 : f32
    %14 = vector.broadcast %cst_7 : f32 to vector<16x1xf32>
    %15 = arith.divf %13, %14 : vector<16x1xf32>
    %16 = vector.broadcast %15 : vector<16x1xf32> to vector<16x32xf32>
    %17 = arith.subf %11, %16 : vector<16x32xf32>
    %18 = vector.broadcast %15 : vector<16x1xf32> to vector<16x32xf32>
    %19 = arith.subf %11, %18 : vector<16x32xf32>
    %20 = arith.mulf %17, %19 : vector<16x32xf32>
    %cst_8 = arith.constant dense<0.000000e+00> : vector<16xf32>
    %21 = vector.multi_reduction <add>, %20, %cst_8 [1] : vector<16x32xf32> to vector<16xf32>
    %22 = vector.shape_cast %21 : vector<16xf32> to vector<16x1xf32>
    %cst_9 = arith.constant 3.200000e+01 : f32
    %23 = vector.broadcast %cst_9 : f32 to vector<16x1xf32>
    %24 = arith.divf %22, %23 : vector<16x1xf32>
    %25 = vector.broadcast %15 : vector<16x1xf32> to vector<16x32xf32>
    %26 = arith.subf %11, %25 : vector<16x32xf32>
    %cst_10 = arith.constant 9.99999974E-6 : f32
    %27 = vector.broadcast %cst_10 : f32 to vector<16x1xf32>
    %28 = arith.addf %24, %27 : vector<16x1xf32>
    %29 = math.rsqrt %28 : vector<16x1xf32>
    %30 = vector.broadcast %29 : vector<16x1xf32> to vector<16x32xf32>
    %31 = arith.mulf %26, %30 : vector<16x32xf32>
    %32 = vector.broadcast %3 : vector<1x32xf32> to vector<16x32xf32>
    %33 = arith.mulf %31, %32 : vector<16x32xf32>
    %34 = vector.broadcast %4 : vector<1x32xf32> to vector<16x32xf32>
    %35 = arith.addf %33, %34 : vector<16x32xf32>
    %cst_11 = arith.constant 5.000000e-01 : f32
    %36 = vector.broadcast %cst_11 : f32 to vector<16x32xf32>
    %37 = arith.mulf %36, %35 : vector<16x32xf32>
    %cst_12 = arith.constant 0.707106769 : f32
    %38 = vector.broadcast %cst_12 : f32 to vector<16x32xf32>
    %39 = arith.mulf %35, %38 : vector<16x32xf32>
    %40 = math.erf %39 : vector<16x32xf32>
    %cst_13 = arith.constant 1.000000e+00 : f32
    %41 = vector.broadcast %cst_13 : f32 to vector<16x32xf32>
    %42 = arith.addf %41, %40 : vector<16x32xf32>
    %43 = arith.mulf %37, %42 : vector<16x32xf32>
    %44 = vector.shape_cast %43 : vector<16x32xf32> to vector<2x8x32xf32>
    %45 = vector.shape_cast %5 : vector<1x32xf32> to vector<1x1x32xf32>
    %46 = vector.broadcast %45 : vector<1x1x32xf32> to vector<2x8x32xf32>
    %47 = arith.mulf %44, %46 : vector<2x8x32xf32>
    %cst_14 = arith.constant dense<0.000000e+00> : vector<2x8xf32>
    %48 = vector.multi_reduction <add>, %47, %cst_14 [2] : vector<2x8x32xf32> to vector<2x8xf32>
    %49 = vector.broadcast %6 : vector<1x1xf32> to vector<2x8xf32>
    %50 = arith.addf %48, %49 : vector<2x8xf32>
    %c0_15 = arith.constant 0 : index
    %c0_16 = arith.constant 0 : index
    %c0_17 = arith.constant 0 : index
    %51 = vector.load %arg2[%c0_15, %c0_16, %c0_17] : memref<2x1x8xi32, #tpu.memory_space<vmem>>, vector<2x1x8xi32>
    %52 = vector.shape_cast %51 : vector<2x1x8xi32> to vector<2x8xi32>
    %c0_i32 = arith.constant 0 : i32
    %53 = vector.broadcast %c0_i32 : i32 to vector<2x8xi32>
    %54 = arith.cmpi eq, %52, %53 : vector<2x8xi32>
    %cst_18 = arith.constant 0xFF800000 : f32
    %55 = vector.broadcast %cst_18 : f32 to vector<2x8xf32>
    %56 = arith.select %54, %55, %50 : vector<2x8xi1>, vector<2x8xf32>
    %cst_19 = arith.constant dense<0xFF800000> : vector<2xf32>
    %57 = vector.multi_reduction <maximumf>, %56, %cst_19 [1] : vector<2x8xf32> to vector<2xf32>
    %58 = vector.shape_cast %57 : vector<2xf32> to vector<2x1xf32>
    %59 = vector.broadcast %58 : vector<2x1xf32> to vector<2x8xf32>
    %60 = arith.subf %56, %59 : vector<2x8xf32>
    %61 = math.exp %60 : vector<2x8xf32>
    %cst_20 = arith.constant dense<0.000000e+00> : vector<2xf32>
    %62 = vector.multi_reduction <add>, %61, %cst_20 [1] : vector<2x8xf32> to vector<2xf32>
    %63 = vector.shape_cast %62 : vector<2xf32> to vector<2x1xf32>
    %64 = tpu.reciprocal %63 {approx = true} : vector<2x1xf32> -> vector<2x1xf32>
    %65 = vector.broadcast %64 : vector<2x1xf32> to vector<2x8xf32>
    %66 = arith.mulf %61, %65 : vector<2x8xf32>
    %67 = vector.shape_cast %66 : vector<2x8xf32> to vector<2x1x8xf32>
    "tpu.trace_start"() <{level = 10 : i32, message = "bqs,bsd->bqd"}> : () -> ()
    %cst_21 = arith.constant dense<0.000000e+00> : vector<2x1x32xf32>
    %68 = tpu.matmul %67, %0, %cst_21 {dimension_numbers = #tpu.dot_dimension_numbers<[2], [1], [1], [2], [0, 0, 0, 1, 1, 2], [0], [0]>} : vector<2x1x8xf32>, vector<2x8x32xf32>, vector<2x1x32xf32> -> vector<2x1x32xf32>
    "tpu.trace_stop"() : () -> ()
    %69 = vector.shape_cast %68 : vector<2x1x32xf32> to vector<2x32xf32>
    %c0_22 = arith.constant 0 : index
    %c0_23 = arith.constant 0 : index
    %70 = vector.load %arg5[%c0_22, %c0_23] : memref<2x32xf32, #tpu.memory_space<vmem>>, vector<2x32xf32>
    tpu.vector_store %arg5[%c0_22, %c0_23], %69 {strides = array<i32>} : memref<2x32xf32, #tpu.memory_space<vmem>>, vector<2x32xf32>,
    return
  }
  func.func @transform_0(%arg0: i32) -> (i32, i32, i32) {
    %c0_i32 = arith.constant 0 : i32
    %c0_i32_0 = arith.constant 0 : i32
    %c0_i32_1 = arith.constant 0 : i32
    return %arg0, %c0_i32, %c0_i32_0 : i32, i32, i32
  }
  func.func @transform_1(%arg0: i32) -> (i32, i32, i32) {
    %c0_i32 = arith.constant 0 : i32
    %c0_i32_0 = arith.constant 0 : i32
    %c0_i32_1 = arith.constant 0 : i32
    return %arg0, %c0_i32, %c0_i32_0 : i32, i32, i32
  }
  func.func @transform_2(%arg0: i32) -> (i32, i32) {
    %c0_i32 = arith.constant 0 : i32
    %c0_i32_0 = arith.constant 0 : i32
    %c0_i32_1 = arith.constant 0 : i32
    return %c0_i32, %c0_i32_0 : i32, i32
  }
  func.func @transform_3(%arg0: i32) -> (i32, i32) {
    %c0_i32 = arith.constant 0 : i32
    %c0_i32_0 = arith.constant 0 : i32
    %c0_i32_1 = arith.constant 0 : i32
    return %c0_i32, %c0_i32_0 : i32, i32
  }
  func.func @transform_4(%arg0: i32) -> (i32, i32) {
    %c0_i32 = arith.constant 0 : i32
    %c0_i32_0 = arith.constant 0 : i32
    return %arg0, %c0_i32 : i32, i32
  }
}

</mosaic_0001>

<llo_original>
// kernel: tpu_custom_call.1
$region0: #{tpu_custom_call.1}
  #allocation0 [shape = 'u32[]', space=smem, size = 0x4, offset = 0x4, fixed_abs, tag = 'smem constant byte address 0x4 - core index']
  #allocation1 [shape = 'u32[72,128]{1,0:T(1,128)}', space=vmem, size = 0x9000, scoped, tag = 'internal scratch']
  %s0 = inlined_call_operand.hbm [shape: f32[2,8,32], index: 0, kind: input, shape index: {}]
  %s1 = inlined_call_operand.hbm [shape: s32[2,1,8], index: 1, kind: input, shape index: {}]
  %s2 = inlined_call_operand.hbm [shape: f32[32,32], index: 2, kind: input, shape index: {}]
  %s3 = inlined_call_operand.hbm [shape: f32[5,32], index: 3, kind: input, shape index: {}]
  %s4 = inlined_call_operand.hbm [shape: f32[2,32], index: 4, kind: output, shape index: {}]
  %s5 = sld [smem:[#allocation0]]
  $region42: #{tpu_custom_call.1} parent=0
    _
  %s7 = ssub.s32 1, %s5
  %s8 = scalar_select 0, %s7, %s5
  $region1: #{tpu_custom_call.1} parent=0
    #allocation2 [shape = 'u8[8192]{0}', space=vmem, size = 0x2000, scoped, tag = 'input window, operand 0, single buffered']
    #allocation3 [shape = 's32[1]{0}', space=sflag, size = 0x4, scoped, tag = 'scoped memory for tpu_custom_call.1']
    #allocation4 [shape = 's32[1]{0}', space=sflag, size = 0x4, scoped, tag = 'scoped memory for tpu_custom_call.1']
    #allocation5 [shape = 'u8[1024]{0}', space=vmem, size = 0x400, scoped, tag = 'input window, operand 1, single buffered']
    #allocation6 [shape = 's32[1]{0}', space=sflag, size = 0x4, scoped, tag = 'scoped memory for tpu_custom_call.1']
    #allocation7 [shape = 'u8[16384]{0}', space=vmem, size = 0x4000, scoped, tag = 'input window, operand 2, single buffered']
    #allocation8 [shape = 'u8[4096]{0}', space=vmem, size = 0x1000, scoped, tag = 'input window, operand 3, single buffered']
    #allocation9 [shape = 's32[1]{0}', space=sflag, size = 0x4, scoped, tag = 'scoped memory for tpu_custom_call.1']
    #allocation10 [shape = 'u8[1024]{0}', space=vmem, size = 0x400, scoped, tag = 'output window, operand 0, single buffered']
    %9 = vsyncpa [#allocation3], 0
    %10 = vsyncpa [#allocation6], 0
    %11 = vsyncpa [#allocation9], 0
    %12 = vsyncpa [#allocation4], 0
    // Predicated region
    $region2: #{tpu_custom_call.1} parent=1 // pred_check
      _
    $region3: #{tpu_custom_call.1} parent=1 // pred_check_branch
      %14 = sbr.rel (0) target = $region5
    $region4: #{tpu_custom_call.1} parent=1 // pred_region
      %16 = vsyncadd [#allocation3], 0
      %s17 = sshll.u32 %s0, 4
      %s18 = int_to_ptr.hbm [resolvable:$true] %s17
      %s19 = sshll.u32 [#allocation2], 4
      %s20 = int_to_ptr.vmem [resolvable:$true] %s19
      %25 = dma.hbm_to_vmem [thread:$0]  %s18, 256, %s20, [#allocation3], 128, 128, 8
    $region5: #{tpu_custom_call.1} parent=1 // pred_fallthru
      _
    // Predicated region
    $region6: #{tpu_custom_call.1} parent=1 // pred_check
      _
    $region7: #{tpu_custom_call.1} parent=1 // pred_check_branch
      %27 = sbr.rel (0) target = $region9
    $region8: #{tpu_custom_call.1} parent=1 // pred_region
      %29 = vsyncadd [#allocation6], 0
      %s30 = sshll.u32 %s1, 4
      %s31 = int_to_ptr.hbm [resolvable:$true] %s30
      %s32 = sshll.u32 [#allocation5], 4
      %s33 = int_to_ptr.vmem [resolvable:$true] %s32
      %38 = dma.hbm_to_vmem [thread:$0]  %s31, 32, %s33, [#allocation6], 16, 16, 1
    $region9: #{tpu_custom_call.1} parent=1 // pred_fallthru
      _
    // Predicated region
    $region10: #{tpu_custom_call.1} parent=1 // pred_check
      _
    $region11: #{tpu_custom_call.1} parent=1 // pred_check_branch
      %40 = sbr.rel (0) target = $region13
    $region12: #{tpu_custom_call.1} parent=1 // pred_region
      %42 = vsyncadd [#allocation6], 0
      %s43 = sshll.u32 %s2, 4
      %s44 = int_to_ptr.hbm [resolvable:$true] %s43
      %s45 = sshll.u32 [#allocation7], 4
      %s46 = int_to_ptr.vmem [resolvable:$true] %s45
      %51 = dma.hbm_to_vmem [thread:$0]  %s44, 512, %s46, [#allocation6], 128, 128, 8
    $region13: #{tpu_custom_call.1} parent=1 // pred_fallthru
      _
    // Predicated region
    $region14: #{tpu_custom_call.1} parent=1 // pred_check
      _
    $region15: #{tpu_custom_call.1} parent=1 // pred_check_branch
      %53 = sbr.rel (0) target = $region17
    $region16: #{tpu_custom_call.1} parent=1 // pred_region
      %55 = vsyncadd [#allocation9], 0
      %s57 = sshll.u32 %s3, 4
      %s58 = int_to_ptr.hbm [resolvable:$true] %s57
      %s59 = sshll.u32 [#allocation8], 4
      %s60 = int_to_ptr.vmem [resolvable:$true] %s59
      %62 = dma.hbm_to_vmem [thread:$0]  %s58, 128, %s60, [#allocation9]
    $region17: #{tpu_custom_call.1} parent=1 // pred_fallthru
      _
    // Predicated region
    $region18: #{tpu_custom_call.1} parent=1 // pred_check
      _
    $region19: #{tpu_custom_call.1} parent=1 // pred_check_branch
      %64 = sbr.rel (0) target = $region21
    $region20: #{tpu_custom_call.1} parent=1 // pred_region
      %66 = dma.done [#allocation3], 256
    $region21: #{tpu_custom_call.1} parent=1 // pred_fallthru
      _
    // Predicated region
    $region22: #{tpu_custom_call.1} parent=1 // pred_check
      _
    $region23: #{tpu_custom_call.1} parent=1 // pred_check_branch
      %68 = sbr.rel (0) target = $region25
    $region24: #{tpu_custom_call.1} parent=1 // pred_region
      %70 = dma.done [#allocation6], 32
    $region25: #{tpu_custom_call.1} parent=1 // pred_fallthru
      _
    // Predicated region
    $region26: #{tpu_custom_call.1} parent=1 // pred_check
      _
    $region27: #{tpu_custom_call.1} parent=1 // pred_check_branch
      %72 = sbr.rel (0) target = $region29
    $region28: #{tpu_custom_call.1} parent=1 // pred_region
      %74 = dma.done [#allocation6], 512
    $region29: #{tpu_custom_call.1} parent=1 // pred_fallthru
      _
    // Predicated region
    $region30: #{tpu_custom_call.1} parent=1 // pred_check
      _
    $region31: #{tpu_custom_call.1} parent=1 // pred_check_branch
      %76 = sbr.rel (0) target = $region33
    $region32: #{tpu_custom_call.1} parent=1 // pred_region
      %78 = dma.done [#allocation9], 128
    $region33: #{tpu_custom_call.1} parent=1 // pred_fallthru
      _
    %v79 = vld [vmem:[#allocation2] sm:$0xff]
    %v80 = vld [vmem:[#allocation2 + $0x8] sm:$0xff]
    %v81 = vld [vmem:[#allocation8] sm:$0x1f]
    %v82 = vld [vmem:[#allocation7] sm:$0xff]
    %v83 = vld [vmem:[#allocation7 + $0x8] sm:$0xff]
    %v84 = vld [vmem:[#allocation7 + $0x10] sm:$0xff]
    %v85 = vld [vmem:[#allocation7 + $0x18] sm:$0xff]
    %v86 = vperm.slane %v81, 0
    %vm87 = vcmask 261120
    %v89 = vsel %vm87, %v79, 0
    %v92 = vsel %vm87, %v80, 0
    %94 = vmatpush.msra.mxu0 0.0
    %95 = vmatpush.msra.mxu0 0.0
    %96 = vmatpush.msra.mxu0 0.0
    %97 = vmatpush.msra.mxu0 0.0
    %98 = vmatpush.msra.mxu0 0.0
    %99 = vmatpush.msra.mxu0 0.0
    %100 = vmatpush.msra.mxu0 0.0
    %101 = vmatpush.msra.mxu0 0.0
    %102 = vmatpush.msra.mxu0 0.0
    %103 = vmatpush.msra.mxu0 0.0
    %104 = vmatpush.msra.mxu0 0.0
    %105 = vmatpush.msra.mxu0 0.0
    %106 = vmatpush.msra.mxu0 %v85
    %107 = vmatpush.msra.mxu0 %v84
    %108 = vmatpush.msra.mxu0 %v83
    %109 = vmatpush.msra.mxu0 %v82
    %110 = vmatmul.f32.gmra.mxu0 %v89
    %v111 = vpop.f32.mrf.mxu0
    %v112 = vadd.f32 %v86, %v111
    %113 = vmatmul.f32.gmra.mxu0 %v92
    %v114 = vpop.f32.mrf.mxu0
    %v115 = vadd.f32 %v86, %v114
    %116 = vdwg.mxu0
    %v117 = vsel %vm87, %v112, 0.0
    %118 = vadd.xlane.f32.xlu0 %v117
    %v119 = vpop.xlane.xlu0 %118
    %v120 = vsel %vm87, %v115, 0.0
    %121 = vadd.xlane.f32.xlu0 %v120
    %v122 = vpop.xlane.xlu0 %121
    %v123 = vrcp.pop 32.0
    %v124 = vmul.f32 32.0, %v123
    %v125 = vsub.f32 1.0, %v124
    %v126 = vmul.f32 %v123, %v125
    %v127 = vadd.f32 %v123, %v126
    %vm128 = vweird.f32 %v123
    %v129 = vsel %vm128, %v123, %v127
    %v130 = vmul.f32 %v119, %v129
    %v131 = vmul.f32 %v122, %v129
    %v132 = vsub.f32 %v112, %v130
    %v133 = vsub.f32 %v115, %v131
    %v134 = vmul.f32 %v132, %v132
    %v135 = vmul.f32 %v133, %v133
    %v136 = vsel %vm87, %v134, 0.0
    %137 = vadd.xlane.f32.xlu0 %v136
    %v138 = vpop.xlane.xlu0 %137
    %v139 = vsel %vm87, %v135, 0.0
    %140 = vadd.xlane.f32.xlu0 %v139
    %v141 = vpop.xlane.xlu0 %140
    %v142 = vmul.f32 %v138, %v129
    %v143 = vmul.f32 %v141, %v129
    %v144 = vadd.f32 %v142, 1e-05
    %v145 = vadd.f32 %v143, 1e-05
    %v146 = vrsqrt.pop %v144
    %v147 = vmul.f32 %v146, %v144
    %v148 = vmul.f32 %v147, %v146
    %v149 = vmul.f32 0.5, %v148
    %v150 = vsub.f32 1.5, %v149
    %v151 = vmul.f32 %v146, %v150
    %vm152 = vweird.f32 %v144
    %vm153 = vweird.f32 %v146
    %vm154 = vmor %vm152, %vm153
    %v155 = vsel %vm154, %v146, %v151
    %v156 = vrsqrt.pop %v145
    %v157 = vmul.f32 %v156, %v145
    %v158 = vmul.f32 %v157, %v156
    %v159 = vmul.f32 0.5, %v158
    %v160 = vsub.f32 1.5, %v159
    %v161 = vmul.f32 %v156, %v160
    %vm162 = vweird.f32 %v145
    %vm163 = vweird.f32 %v156
    %vm164 = vmor %vm162, %vm163
    %v165 = vsel %vm164, %v156, %v161
    %v166 = vmul.f32 %v132, %v155
    %v167 = vmul.f32 %v133, %v165
    %v168 = vperm.slane %v81, 1
    %v169 = vmul.f32 %v166, %v168
    %v170 = vmul.f32 %v167, %v168
    %v171 = vperm.slane %v81, 2
    %v172 = vadd.f32 %v169, %v171
    %v173 = vadd.f32 %v170, %v171
    %v174 = vmul.f32 %v172, 0.5
    %v175 = vmul.f32 %v173, 0.5
    %v176 = vmul.f32 %v172, 0.70710677
    %v177 = vmul.f32 %v173, 0.70710677
    %v178 = vmul.f32 %v176, %v176
    %v179 = vmin.f32 16.0, %v178
    %v180 = vmul.f32 %v179, 2.1237322e-06
    %v181 = vadd.f32 %v180, 0.00028619796
    %v182 = vmul.f32 %v179, %v181
    %v183 = vadd.f32 %v182, 0.0036580483
    %v184 = vmul.f32 %v179, %v183
    %v185 = vadd.f32 %v184, 0.05243302
    %v186 = vmul.f32 %v179, %v185
    %v187 = vadd.f32 %v186, 0.18741608
    %v188 = vmul.f32 %v179, %v187
    %v189 = vadd.f32 %v188, 1.1283791
    %v190 = vmul.f32 %v176, %v189
    %v191 = vmul.f32 %v179, 3.8918573e-05
    %v192 = vadd.f32 %v191, 0.001143296
    %v193 = vmul.f32 %v179, %v192
    %v194 = vadd.f32 %v193, 0.014752088
    %v195 = vmul.f32 %v179, %v194
    %v196 = vadd.f32 %v195, 0.112945676
    %v197 = vmul.f32 %v179, %v196
    %v198 = vadd.f32 %v197, 0.4994258
    %v199 = vmul.f32 %v179, %v198
    %v200 = vadd.f32 %v199, 1.0
    %v201 = vrcp.pop %v200
    %v202 = vmul.f32 %v200, %v201
    %v203 = vsub.f32 1.0, %v202
    %v204 = vmul.f32 %v201, %v203
    %v205 = vadd.f32 %v201, %v204
    %vm206 = vweird.f32 %v200
    %vm207 = vweird.f32 %v201
    %vm208 = vmor %vm206, %vm207
    %v209 = vsel %vm208, %v201, %v205
    %v210 = vand.u32 2147483647, %v200
    %vm211 = vcmp.eq.f32.partialorder %v210, 8.507059e+37
    %v212 = vand.u32 %v200, 2147483648
    %v213 = vor.u32 1.1754944e-38, %v212
    %v214 = vsel %vm211, %v213, %v209
    %v215 = vmul.f32 %v190, %v214
    %v216 = vmin.f32 %v215, 1.0
    %v217 = vmax.f32 %v216, -1.0
    %v218 = vmul.f32 %v177, %v177
    %v219 = vmin.f32 16.0, %v218
    %v220 = vmul.f32 %v219, 2.1237322e-06
    %v221 = vadd.f32 %v220, 0.00028619796
    %v222 = vmul.f32 %v219, %v221
    %v223 = vadd.f32 %v222, 0.0036580483
    %v224 = vmul.f32 %v219, %v223
    %v225 = vadd.f32 %v224, 0.05243302
    %v226 = vmul.f32 %v219, %v225
    %v227 = vadd.f32 %v226, 0.18741608
    %v228 = vmul.f32 %v219, %v227
    %v229 = vadd.f32 %v228, 1.1283791
    %v230 = vmul.f32 %v177, %v229
    %v231 = vmul.f32 %v219, 3.8918573e-05
    %v232 = vadd.f32 %v231, 0.001143296
    %v233 = vmul.f32 %v219, %v232
    %v234 = vadd.f32 %v233, 0.014752088
    %v235 = vmul.f32 %v219, %v234
    %v236 = vadd.f32 %v235, 0.112945676
    %v237 = vmul.f32 %v219, %v236
    %v238 = vadd.f32 %v237, 0.4994258
    %v239 = vmul.f32 %v219, %v238
    %v240 = vadd.f32 %v239, 1.0
    %v241 = vrcp.pop %v240
    %v242 = vmul.f32 %v240, %v241
    %v243 = vsub.f32 1.0, %v242
    %v244 = vmul.f32 %v241, %v243
    %v245 = vadd.f32 %v241, %v244
    %vm246 = vweird.f32 %v240
    %vm247 = vweird.f32 %v241
    %vm248 = vmor %vm246, %vm247
    %v249 = vsel %vm248, %v241, %v245
    %v250 = vand.u32 2147483647, %v240
    %vm251 = vcmp.eq.f32.partialorder %v250, 8.507059e+37
    %v252 = vand.u32 %v240, 2147483648
    %v253 = vor.u32 1.1754944e-38, %v252
    %v254 = vsel %vm251, %v253, %v249
    %v255 = vmul.f32 %v230, %v254
    %v256 = vmin.f32 %v255, 1.0
    %v257 = vmax.f32 %v256, -1.0
    %v258 = vadd.f32 %v217, 1.0
    %v259 = vadd.f32 %v257, 1.0
    %v260 = vmul.f32 %v174, %v258
    %v261 = vmul.f32 %v175, %v259
    %v262 = vperm.slane %v81, 3
    %v263 = vmul.f32 %v260, %v262
    %v264 = vmul.f32 %v261, %v262
    %v265 = vsel %vm87, %v263, 0.0
    %266 = vadd.xlane.f32.xlu0 %v265
    %v267 = vpop.xlane.xlu0 %266
    %v268 = vsel %vm87, %v264, 0.0
    %269 = vadd.xlane.f32.xlu0 %v268
    %v270 = vpop.xlane.xlu0 %269
    %v272 = vrot.slane %v81, 4
    %s273 = vtos %v272
    %v274 = vstv %s273
    %v276 = vadd.f32 %v267, %v274
    %v277 = vadd.f32 %v270, %v274
    %v278 = vld [vmem:[#allocation5] sm:$0x1]
    %v279 = vld [vmem:[#allocation5 + $0x1] sm:$0x1]
    %vm280 = vcmp.eq.s32.totalorder %v278, 0
    %vm281 = vcmp.eq.s32.totalorder %v279, 0
    %v284 = vperm.slane %v276, 0
    %v285 = vperm.slane %v276, 1
    %v286 = vperm.slane %v276, 2
    %v287 = vperm.slane %v276, 3
    %v288 = vperm.slane %v276, 4
    %v289 = vperm.slane %v276, 5
    %v290 = vperm.slane %v276, 6
    %v291 = vperm.slane %v276, 7
    %v292 = vperm.slane %v277, 0
    %v293 = vperm.slane %v277, 1
    %v294 = vperm.slane %v277, 2
    %v295 = vperm.slane %v277, 3
    %v296 = vperm.slane %v277, 4
    %v297 = vperm.slane %v277, 5
    %v298 = vperm.slane %v277, 6
    %v299 = vperm.slane %v277, 7
    %300 = vst [vmem:[#allocation1] ss:$9 sm:$0xff] %v284
    %s301 = scalar_lea.vmem [#allocation1], 1
    %302 = vst [vmem:[%s301] ss:$9 sm:$0xff] %v285
    %s303 = scalar_lea.vmem [#allocation1], 2
    %304 = vst [vmem:[%s303] ss:$9 sm:$0xff] %v286
    %s305 = scalar_lea.vmem [#allocation1], 3
    %306 = vst [vmem:[%s305] ss:$9 sm:$0xff] %v287
    %s307 = scalar_lea.vmem [#allocation1], 4
    %308 = vst [vmem:[%s307] ss:$9 sm:$0xff] %v288
    %s309 = scalar_lea.vmem [#allocation1], 5
    %310 = vst [vmem:[%s309] ss:$9 sm:$0xff] %v289
    %s311 = scalar_lea.vmem [#allocation1], 6
    %312 = vst [vmem:[%s311] ss:$9 sm:$0xff] %v290
    %s313 = scalar_lea.vmem [#allocation1], 7
    %314 = vst [vmem:[%s313] ss:$9 sm:$0xff] %v291
    %v315 = vld [vmem:[#allocation1] sm:$0xff]
    %316 = vst [vmem:[#allocation1] ss:$9 sm:$0xff] %v292
    %317 = vst [vmem:[%s301] ss:$9 sm:$0xff] %v293
    %318 = vst [vmem:[%s303] ss:$9 sm:$0xff] %v294
    %319 = vst [vmem:[%s305] ss:$9 sm:$0xff] %v295
    %320 = vst [vmem:[%s307] ss:$9 sm:$0xff] %v296
    %321 = vst [vmem:[%s309] ss:$9 sm:$0xff] %v297
    %322 = vst [vmem:[%s311] ss:$9 sm:$0xff] %v298
    %323 = vst [vmem:[%s313] ss:$9 sm:$0xff] %v299
    %v324 = vld [vmem:[#allocation1] sm:$0xff]
    %325 = vset.pattern.permute.xlu0 0
    %326 = vperm.xlu0 %325, %v315
    %v327 = vpop.permute.xlu0 %326
    %328 = vset.pattern.permute.xlu0 0
    %329 = vperm.xlu0 %328, %v324
    %v330 = vpop.permute.xlu0 %329
    %v331 = vlaneseq
    %v332 = vand.u32 %v331, 127
    %v333 = vperm.slane %v327, %v332
    %v334 = vperm.slane %v330, %v332
    %v337 = vsel %vm280, -inf, %v333
    %v338 = vsel %vm281, -inf, %v334
    %341 = vst [vmem:[#allocation1] ss:$9 sm:$0xff] %v337
    %s342 = scalar_lea.vmem [#allocation1], 1
    %343 = vst [vmem:[%s342] ss:$9 sm:$0xff] %v338
    %v344 = vld [vmem:[#allocation1] sm:$0xff]
    %vm346 = vcmask 58368
    %v347 = vsel %vm346, %v344, -inf
    %348 = vmax.xlane.f32.xlu0 %v347
    %v349 = vpop.xlane.xlu0 %348
    %v351 = vperm.slane %v349, 0
    %v352 = vperm.slane %v349, 1
    %v355 = vsub.f32 %v337, %v351
    %v356 = vsub.f32 %v338, %v352
    %v357 = vmul.f32 %v355, 1.442695
    %v358 = vpow.pop %v357
    %v359 = vmul.f32 %v356, 1.442695
    %v360 = vpow.pop %v359
    %363 = vst [vmem:[#allocation1] ss:$9 sm:$0xff] %v358
    %s364 = scalar_lea.vmem [#allocation1], 1
    %365 = vst [vmem:[%s364] ss:$9 sm:$0xff] %v360
    %v366 = vld [vmem:[#allocation1] sm:$0xff]
    %v368 = vsel %vm346, %v366, 0.0
    %369 = vadd.xlane.f32.xlu0 %v368
    %v370 = vpop.xlane.xlu0 %369
    %v371 = vrcp.pop %v370
    %v373 = vperm.slane %v371, 0
    %v374 = vperm.slane %v371, 1
    %v377 = vmul.f32 %v358, %v373
    %v378 = vmul.f32 %v360, %v374
    %vm379 = vcmask 64512
    %v381 = vsel %vm379, %v377, 0
    %383 = vmatpush.msra.mxu0 0.0
    %384 = vmatpush.msra.mxu0 0.0
    %385 = vmatpush.msra.mxu0 0.0
    %386 = vmatpush.msra.mxu0 0.0
    %387 = vmatpush.msra.mxu0 0.0
    %388 = vmatpush.msra.mxu0 0.0
    %389 = vmatpush.msra.mxu0 0.0
    %390 = vmatpush.msra.mxu0 0.0
    %391 = vmatpush.msra.mxu0 0.0
    %392 = vmatpush.msra.mxu0 0.0
    %393 = vmatpush.msra.mxu0 0.0
    %394 = vmatpush.msra.mxu0 0.0
    %395 = vmatpush.msra.mxu0 0.0
    %396 = vmatpush.msra.mxu0 0.0
    %397 = vmatpush.msra.mxu0 0.0
    %398 = vmatpush.msra.mxu0 %v79
    %399 = vmatmul.f32.gmra.mxu0 %v381
    %v400 = vpop.f32.mrf.mxu0
    %v401 = vadd.f32 0.0, %v400
    %402 = vdwg.mxu0
    %v404 = vsel %vm379, %v378, 0
    %406 = vmatpush.msra.mxu0 0.0
    %407 = vmatpush.msra.mxu0 0.0
    %408 = vmatpush.msra.mxu0 0.0
    %409 = vmatpush.msra.mxu0 0.0
    %410 = vmatpush.msra.mxu0 0.0
    %411 = vmatpush.msra.mxu0 0.0
    %412 = vmatpush.msra.mxu0 0.0
    %413 = vmatpush.msra.mxu0 0.0
    %414 = vmatpush.msra.mxu0 0.0
    %415 = vmatpush.msra.mxu0 0.0
    %416 = vmatpush.msra.mxu0 0.0
    %417 = vmatpush.msra.mxu0 0.0
    %418 = vmatpush.msra.mxu0 0.0
    %419 = vmatpush.msra.mxu0 0.0
    %420 = vmatpush.msra.mxu0 0.0
    %421 = vmatpush.msra.mxu0 %v80
    %422 = vmatmul.f32.gmra.mxu0 %v404
    %v423 = vpop.f32.mrf.mxu0
    %v424 = vadd.f32 0.0, %v423
    %425 = vdwg.mxu0
    %v428 = vrot.slane %v424, 7
    %vm429 = vcmask 1041409
    %v430 = vsel %vm429, %v428, %v401
    %vm432 = vcmask 254976
    %433 = vst.msk [vmem:[#allocation10] sm:$0x3] %vm432, %v430
    // Predicated region
    $region34: #{tpu_custom_call.1} parent=1 // pred_check
      _
    $region35: #{tpu_custom_call.1} parent=1 // pred_check_branch
      %435 = sbr.rel (0) target = $region37
    $region36: #{tpu_custom_call.1} parent=1 // pred_region
      %437 = vsyncadd [#allocation4], 0
      %s439 = sshll.u32 [#allocation10], 4
      %s440 = int_to_ptr.vmem [resolvable:$true] %s439
      %s441 = sshll.u32 %s4, 4
      %s442 = int_to_ptr.hbm [resolvable:$true] %s441
      %444 = dma.vmem_to_hbm [thread:$0]  %s440, 32, %s442, [#allocation4]
    $region37: #{tpu_custom_call.1} parent=1 // pred_fallthru
      _
    // Predicated region
    $region38: #{tpu_custom_call.1} parent=1 // pred_check
      _
    $region39: #{tpu_custom_call.1} parent=1 // pred_check_branch
      %446 = sbr.rel (0) target = $region41
    $region40: #{tpu_custom_call.1} parent=1 // pred_region
      %448 = dma.done [#allocation4], 32
    $region41: #{tpu_custom_call.1} parent=1 // pred_fallthru
      _
    %449 = vsyncpa [#allocation3], 1
    %450 = vsyncpa [#allocation6], 1
    %451 = vsyncpa [#allocation9], 1
    %452 = vsyncpa [#allocation4], 1

</llo_original>
